<compile_context>
chip_gen: v7x
topology: tpu7x:2x2x1
jax: 0.10.0
libtpu: 0.0.40
codegen_flags: <defaults>
</compile_context>

<pallas_src>
import jax
import jax.numpy as jnp
from jax.experimental import pallas as pl
from jax.experimental.pallas import tpu as pltpu

EPS = 1e-5
_LANE = 128


# ----------------------------------------------------------------------------
# Kernels
# ----------------------------------------------------------------------------
def _stats_kernel(x_ref, sum_ref, sumsq_ref):
    """Per-channel sum / sum-of-squares for one N-block.

    x_ref:               (n_tile, C, hw_tile) input block.
    sum_ref, sumsq_ref:  (C, 1) f32 partials for this N-block, resident across
                         the HW-tile grid axis; zeroed at the first HW tile of
                         every N-block (per-output-block init -> safe with a
                         megacore-parallel N axis).
    """
    @pl.when(pl.program_id(1) == 0)
    def _():
        sum_ref[...] = jnp.zeros_like(sum_ref)
        sumsq_ref[...] = jnp.zeros_like(sumsq_ref)

    x = x_ref[...].astype(jnp.float32)                     # (n_tile, C, T)
    xs = jnp.sum(x, axis=0)                                # (C, T) slab adds (VPU)
    xq = jnp.sum(x * x, axis=0)                            # (C, T)
    sum_ref[...] += jnp.sum(xs, axis=1, keepdims=True)     # (C, 1)
    sumsq_ref[...] += jnp.sum(xq, axis=1, keepdims=True)   # (C, 1)


def _affine_kernel(x_ref, scale_ref, bias_ref, o_ref):
    """Pure per-channel FMA: y = x * scale_c + bias_c (scale/bias are (C,1) f32)."""
    o_ref[...] = (x_ref[...] * scale_ref[...] + bias_ref[...]).astype(o_ref.dtype)


# ----------------------------------------------------------------------------
# Tiling / VMEM helpers
# ----------------------------------------------------------------------------
def _vmem_capacity_bytes():
    """Physical VMEM per core; conservative 64 MiB (v7x) if the query fails."""
    try:
        cap = getattr(pltpu.get_tpu_info(), "vmem_capacity_bytes", None)
        if cap:
            return int(cap)
    except Exception:
        pass
    return 64 * 1024 * 1024


def _choose_tiles(n, c, hw_pad, itemsize, budget_bytes):
    """hw_tile = largest 128-multiple divisor of hw_pad whose (1, C, hw_tile)
    block fits the byte budget; n_tile then grows (divisor of N) to fill the
    remaining budget so each grid step moves multiple MiB even for small C."""
    k = hw_pad // _LANE
    hw_tile = _LANE
    for d in range(k, 0, -1):
        if k % d == 0 and c * d * _LANE * itemsize <= budget_bytes:
            hw_tile = d * _LANE
            break
    # TODO(synk): if C alone makes a (1, C, 128) block exceed the budget we
    # would also need to tile C; not needed for realistic CapNorm2d layers.
    n_tile = 1
    for d in range(n, 0, -1):
        if n % d == 0 and d * c * hw_tile * itemsize <= budget_bytes:
            n_tile = d
            break
    return n_tile, hw_tile


def _grid_params(x3):
    n, c, hw_pad = x3.shape
    itemsize = jnp.dtype(x3.dtype).itemsize
    cap = _vmem_capacity_bytes()
    # Per-block byte target ~cap/16: 4 MiB on v7x (64 MiB VMEM), 8 MiB on
    # v5e/v6e (128 MiB VMEM), floored at 1 MiB.
    budget = min(8 << 20, max(1 << 20, cap // 16))
    n_tile, hw_tile = _choose_tiles(n, c, hw_pad, itemsize, budget)
    block_bytes = n_tile * c * hw_tile * itemsize
    # The affine pass double-buffers input AND output (~4 blocks); add slack
    # for compiler scratch and stay well under physical VMEM (v7x: 64 MiB).
    vmem_limit = int(max(16 << 20, min(6 * block_bytes + (8 << 20), (cap * 3) // 4)))
    return n_tile, hw_tile, vmem_limit


# ----------------------------------------------------------------------------
# Pallas-call wrappers
# ----------------------------------------------------------------------------
def _batch_stats(x3, n_tile, hw_tile, count, vmem_limit):
    """Streaming per-channel mean / (biased) var over (N, HW_pad)."""
    n, c, hw_pad = x3.shape
    nb, nt = n // n_tile, hw_pad // hw_tile
    s, ss = pl.pallas_call(
        _stats_kernel,
        out_shape=(
            jax.ShapeDtypeStruct((nb, c, 1), jnp.float32),
            jax.ShapeDtypeStruct((nb, c, 1), jnp.float32),
        ),
        grid=(nb, nt),
        in_specs=[pl.BlockSpec((n_tile, c, hw_tile), lambda i, t: (i, 0, t))],
        out_specs=(
            pl.BlockSpec((None, c, 1), lambda i, t: (i, 0, 0)),
            pl.BlockSpec((None, c, 1), lambda i, t: (i, 0, 0)),
        ),
        compiler_params=pltpu.CompilerParams(
            dimension_semantics=("parallel", "arbitrary"),
            vmem_limit_bytes=vmem_limit),
    )(x3)
    total = jnp.sum(s[:, :, 0], axis=0)        # (C,)
    total_sq = jnp.sum(ss[:, :, 0], axis=0)    # (C,)
    mean = total / count
    # TODO(synk): E[x^2]-mean^2 in f32 can lose precision when |mean| >> std and
    # N*H*W is huge; a shifted / Welford-combine accumulation would be sturdier.
    var = jnp.maximum(total_sq / count - mean * mean, 0.0)
    return mean, var


def _apply_affine(x3, scale, bias, n_tile, hw_tile, vmem_limit):
    """Elementwise streamed pass: y = x * scale_c + bias_c, NCHW layout."""
    n, c, hw_pad = x3.shape
    nb, nt = n // n_tile, hw_pad // hw_tile
    return pl.pallas_call(
        _affine_kernel,
        out_shape=jax.ShapeDtypeStruct((n, c, hw_pad), x3.dtype),
        grid=(nb, nt),
        in_specs=[
            pl.BlockSpec((n_tile, c, hw_tile), lambda i, t: (i, 0, t)),
            pl.BlockSpec((c, 1), lambda i, t: (0, 0)),
            pl.BlockSpec((c, 1), lambda i, t: (0, 0)),
        ],
        out_specs=pl.BlockSpec((n_tile, c, hw_tile), lambda i, t: (i, 0, t)),
        compiler_params=pltpu.CompilerParams(
            dimension_semantics=("parallel", "parallel"),
            vmem_limit_bytes=vmem_limit),
    )(x3, scale.reshape(c, 1).astype(jnp.float32),
      bias.reshape(c, 1).astype(jnp.float32))


# ----------------------------------------------------------------------------
# Public forward
# ----------------------------------------------------------------------------
def cap_norm2d(x, running_mean, running_var, *, training, momentum=0.1,
               track_running_stats=True):
    """x: (N, C, H, W).  Returns (y, new_running_mean, new_running_var)."""
    N, C, H, W = x.shape
    HW = H * W
    NHW = N * HW
    hw_pad = ((HW + _LANE - 1) // _LANE) * _LANE

    x3 = x.reshape(N, C, HW)                      # free reshape — no transpose
    if hw_pad != HW:
        # Lane-align HW: zero pad is exact for sum/sumsq (we divide by the true
        # NHW) and keeps the affine output lane-dense; pad sliced off below.
        x3 = jnp.pad(x3, ((0, 0), (0, 0), (0, hw_pad - HW)))

    n_tile, hw_tile, vmem_limit = _grid_params(x3)

    # Mirrors the module's bn_training logic: batch stats in training, and in
    # eval only when the buffers are None.
    use_batch_stats = training or (running_mean is None and running_var is None)
    if use_batch_stats:
        mean, var = _batch_stats(x3, n_tile, hw_tile, NHW, vmem_limit)
    else:
        mean = running_mean.astype(jnp.float32)
        var = running_var.astype(jnp.float32)

    # CapNorm: denominator capped from below at 1 — activations only shrink.
    scale = 1.0 / jnp.maximum(jnp.sqrt(var + EPS), 1.0)
    bias = -mean * scale

    y = _apply_affine(x3, scale, bias, n_tile, hw_tile, vmem_limit)
    if hw_pad != HW:
        y = y[:, :, :HW]
    y = y.reshape(N, C, H, W)

    new_rm, new_rv = running_mean, running_var
    if training and track_running_stats and running_mean is not None:
        # PyTorch stores the *unbiased* variance in running_var.
        # TODO(synk): momentum=None (cumulative moving average) is handled by
        # the caller passing 1/num_batches_tracked as `momentum`.
        unbiased = var * (NHW / max(NHW - 1, 1))
        new_rm = (1.0 - momentum) * running_mean + momentum * mean
        new_rv = (1.0 - momentum) * running_var + momentum * unbiased
    return y, new_rm, new_rv


# ----------------------------------------------------------------------------
# Plain-JAX reference
# ----------------------------------------------------------------------------
def _reference_capnorm(x, running_mean, running_var, training):
    if training:
        mean = jnp.mean(x, axis=(0, 2, 3))
        var = jnp.mean((x - mean[None, :, None, None]) ** 2, axis=(0, 2, 3))
    else:
        mean, var = running_mean, running_var
    denom = jnp.maximum(jnp.sqrt(var + EPS), 1.0)
    return (x - mean[None, :, None, None]) / denom[None, :, None, None]


if __name__ == "__main__":
    key = jax.random.PRNGKey(0)
    k1, k2, k3 = jax.random.split(key, 3)

    # --- Case 1: small module-consistent shape (single block) ---------------
    N, C, H, W = 2, 4, 16, 16
    x = jax.random.normal(k1, (N, C, H, W), dtype=jnp.float32) * 2.0 + 0.5
    running_mean = jnp.zeros((C,), jnp.float32)   # _CapNorm.reset_running_stats()
    running_var = jnp.ones((C,), jnp.float32)

    y_train, new_rm, new_rv = cap_norm2d(
        x, running_mean, running_var, training=True, momentum=0.1)
    jax.block_until_ready(y_train)
    ref_train = _reference_capnorm(x, running_mean, running_var, True)
    assert jnp.allclose(y_train, ref_train, atol=1e-5, rtol=1e-5)

    y_eval, _, _ = cap_norm2d(x, new_rm, new_rv, training=False, momentum=0.1)
    jax.block_until_ready(y_eval)
    ref_eval = _reference_capnorm(x, new_rm, new_rv, False)
    assert jnp.allclose(y_eval, ref_eval, atol=1e-5, rtol=1e-5)

    # --- Case 2: larger HW, exercises streamed accumulation -----------------
    N2, C2, H2, W2 = 2, 8, 64, 64
    x2 = jax.random.normal(k2, (N2, C2, H2, W2), dtype=jnp.float32) * 3.0 - 1.0
    rm2 = jnp.zeros((C2,), jnp.float32)
    rv2 = jnp.ones((C2,), jnp.float32)
    y2, _, _ = cap_norm2d(x2, rm2, rv2, training=True, momentum=0.1)
    jax.block_until_ready(y2)
    ref2 = _reference_capnorm(x2, rm2, rv2, True)
    assert jnp.allclose(y2, ref2, atol=1e-4, rtol=1e-4)

    # --- Case 3: HW not divisible by 128 (pad path, HW=196 -> 256) ----------
    N3, C3, H3, W3 = 2, 8, 14, 14
    x3 = jax.random.normal(k3, (N3, C3, H3, W3), dtype=jnp.float32) * 1.5 + 0.25
    rm3 = jnp.zeros((C3,), jnp.float32)
    rv3 = jnp.ones((C3,), jnp.float32)
    y3, _, _ = cap_norm2d(x3, rm3, rv3, training=True, momentum=0.1)
    jax.block_until_ready(y3)
    ref3 = _reference_capnorm(x3, rm3, rv3, True)
    assert jnp.allclose(y3, ref3, atol=1e-4, rtol=1e-4)

    print("KERNEL_OK")
</pallas_src>

<mosaic_0001>
module attributes {stable_mosaic.version = 11 : i64} {
  func.func @_stats_kernel(%arg0: i32, %arg1: i32, %arg2: memref<2x4x256xf32, #tpu.memory_space<vmem>>, %arg3: memref<1x4x1xf32, #tpu.memory_space<vmem>>, %arg4: memref<1x4x1xf32, #tpu.memory_space<vmem>>) attributes {dimension_semantics = [#tpu.dimension_semantics<parallel>, #tpu.dimension_semantics<arbitrary>], iteration_bounds = array<i64: 1, 1>, scalar_prefetch = 0 : i64, scratch_operands = 0 : i64, tpu.core_type = #tpu.core_type<tc>, window_params = [{transform_indices = @transform_0, window_bounds = array<i64: 2, 4, 256>}, {transform_indices = @transform_1, window_bounds = array<i64: 1, 4, 1>}, {transform_indices = @transform_2, window_bounds = array<i64: 1, 4, 1>}]} {
    %c0_i32 = arith.constant 0 : i32
    %0 = arith.cmpi eq, %arg1, %c0_i32 : i32
    %1 = arith.extui %0 : i1 to i32
    %c0_i32_0 = arith.constant 0 : i32
    %2 = arith.cmpi ne, %1, %c0_i32_0 : i32
    scf.if %2 {
      %cst_18 = arith.constant 0.000000e+00 : f32
      %23 = vector.broadcast %cst_18 : f32 to vector<4x1xf32>
      %c0_19 = arith.constant 0 : index
      %c0_20 = arith.constant 0 : index
      %c0_21 = arith.constant 0 : index
      %24 = vector.load %arg3[%c0_19, %c0_20, %c0_21] : memref<1x4x1xf32, #tpu.memory_space<vmem>>, vector<1x4x1xf32>
      %25 = vector.shape_cast %24 : vector<1x4x1xf32> to vector<4x1xf32>
      %26 = vector.shape_cast %23 : vector<4x1xf32> to vector<1x4x1xf32>
      tpu.vector_store %arg3[%c0_19, %c0_20, %c0_21], %26 {strides = array<i32>} : memref<1x4x1xf32, #tpu.memory_space<vmem>>, vector<1x4x1xf32>,
      %cst_22 = arith.constant 0.000000e+00 : f32
      %27 = vector.broadcast %cst_22 : f32 to vector<4x1xf32>
      %c0_23 = arith.constant 0 : index
      %c0_24 = arith.constant 0 : index
      %c0_25 = arith.constant 0 : index
      %28 = vector.load %arg4[%c0_23, %c0_24, %c0_25] : memref<1x4x1xf32, #tpu.memory_space<vmem>>, vector<1x4x1xf32>
      %29 = vector.shape_cast %28 : vector<1x4x1xf32> to vector<4x1xf32>
      %30 = vector.shape_cast %27 : vector<4x1xf32> to vector<1x4x1xf32>
      tpu.vector_store %arg4[%c0_23, %c0_24, %c0_25], %30 {strides = array<i32>} : memref<1x4x1xf32, #tpu.memory_space<vmem>>, vector<1x4x1xf32>,
    } else {
    }
    %c0 = arith.constant 0 : index
    %c0_1 = arith.constant 0 : index
    %c0_2 = arith.constant 0 : index
    %3 = vector.load %arg2[%c0, %c0_1, %c0_2] : memref<2x4x256xf32, #tpu.memory_space<vmem>>, vector<2x4x256xf32>
    %cst = arith.constant dense<0.000000e+00> : vector<4x256xf32>
    %4 = vector.multi_reduction <add>, %3, %cst [0] : vector<2x4x256xf32> to vector<4x256xf32>
    %5 = arith.mulf %3, %3 : vector<2x4x256xf32>
    %cst_3 = arith.constant dense<0.000000e+00> : vector<4x256xf32>
    %6 = vector.multi_reduction <add>, %5, %cst_3 [0] : vector<2x4x256xf32> to vector<4x256xf32>
    %c0_4 = arith.constant 0 : index
    %c0_5 = arith.constant 0 : index
    %c0_6 = arith.constant 0 : index
    %7 = vector.load %arg3[%c0_4, %c0_5, %c0_6] : memref<1x4x1xf32, #tpu.memory_space<vmem>>, vector<1x4x1xf32>
    %8 = vector.shape_cast %7 : vector<1x4x1xf32> to vector<4x1xf32>
    %cst_7 = arith.constant dense<0.000000e+00> : vector<4xf32>
    %9 = vector.multi_reduction <add>, %4, %cst_7 [1] : vector<4x256xf32> to vector<4xf32>
    %10 = vector.shape_cast %9 : vector<4xf32> to vector<4x1xf32>
    %11 = arith.addf %8, %10 : vector<4x1xf32>
    %c0_8 = arith.constant 0 : index
    %c0_9 = arith.constant 0 : index
    %c0_10 = arith.constant 0 : index
    %12 = vector.load %arg3[%c0_8, %c0_9, %c0_10] : memref<1x4x1xf32, #tpu.memory_space<vmem>>, vector<1x4x1xf32>
    %13 = vector.shape_cast %12 : vector<1x4x1xf32> to vector<4x1xf32>
    %14 = vector.shape_cast %11 : vector<4x1xf32> to vector<1x4x1xf32>
    tpu.vector_store %arg3[%c0_8, %c0_9, %c0_10], %14 {strides = array<i32>} : memref<1x4x1xf32, #tpu.memory_space<vmem>>, vector<1x4x1xf32>,
    %c0_11 = arith.constant 0 : index
    %c0_12 = arith.constant 0 : index
    %c0_13 = arith.constant 0 : index
    %15 = vector.load %arg4[%c0_11, %c0_12, %c0_13] : memref<1x4x1xf32, #tpu.memory_space<vmem>>, vector<1x4x1xf32>
    %16 = vector.shape_cast %15 : vector<1x4x1xf32> to vector<4x1xf32>
    %cst_14 = arith.constant dense<0.000000e+00> : vector<4xf32>
    %17 = vector.multi_reduction <add>, %6, %cst_14 [1] : vector<4x256xf32> to vector<4xf32>
    %18 = vector.shape_cast %17 : vector<4xf32> to vector<4x1xf32>
    %19 = arith.addf %16, %18 : vector<4x1xf32>
    %c0_15 = arith.constant 0 : index
    %c0_16 = arith.constant 0 : index
    %c0_17 = arith.constant 0 : index
    %20 = vector.load %arg4[%c0_15, %c0_16, %c0_17] : memref<1x4x1xf32, #tpu.memory_space<vmem>>, vector<1x4x1xf32>
    %21 = vector.shape_cast %20 : vector<1x4x1xf32> to vector<4x1xf32>
    %22 = vector.shape_cast %19 : vector<4x1xf32> to vector<1x4x1xf32>
    tpu.vector_store %arg4[%c0_15, %c0_16, %c0_17], %22 {strides = array<i32>} : memref<1x4x1xf32, #tpu.memory_space<vmem>>, vector<1x4x1xf32>,
    return
  }
  func.func @transform_0(%arg0: i32, %arg1: i32) -> (i32, i32, i32) {
    %c0_i32 = arith.constant 0 : i32
    %c0_i32_0 = arith.constant 0 : i32
    return %arg0, %c0_i32, %arg1 : i32, i32, i32
  }
  func.func @transform_1(%arg0: i32, %arg1: i32) -> (i32, i32, i32) {
    %c0_i32 = arith.constant 0 : i32
    %c0_i32_0 = arith.constant 0 : i32
    %c0_i32_1 = arith.constant 0 : i32
    return %arg0, %c0_i32, %c0_i32_0 : i32, i32, i32
  }
  func.func @transform_2(%arg0: i32, %arg1: i32) -> (i32, i32, i32) {
    %c0_i32 = arith.constant 0 : i32
    %c0_i32_0 = arith.constant 0 : i32
    %c0_i32_1 = arith.constant 0 : i32
    return %arg0, %c0_i32, %c0_i32_0 : i32, i32, i32
  }
}

</mosaic_0001>

<llo_original>
// kernel: tpu_custom_call.1
$region0: #{tpu_custom_call.1}
  #allocation0 [shape = 'u32[]', space=smem, size = 0x4, offset = 0x4, fixed_abs, tag = 'smem constant byte address 0x4 - core index']
  #allocation1 [shape = 'u32[144,128]{1,0:T(1,128)}', space=vmem, size = 0x12000, scoped, tag = 'internal scratch']
  %s0 = inlined_call_operand.hbm [shape: f32[2,4,256], index: 0, kind: input, shape index: {}]
  %s1 = inlined_call_operand.vmem [shape: f32[1,4,1], index: 1, kind: output, shape index: {0}]
  %s2 = inlined_call_operand.vmem [shape: f32[1,4,1], index: 2, kind: output, shape index: {1}]
  %3 = xla_tuple %s1, %s2
  %s4 = sld [smem:[#allocation0]]
  $region30: #{tpu_custom_call.1} parent=0
    _
  %s6 = ssub.s32 1, %s4
  %s7 = scalar_select 0, %s6, %s4
  $region1: #{tpu_custom_call.1} parent=0
    #allocation2 [shape = 'u8[8192]{0}', space=vmem, size = 0x2000, scoped, tag = 'input window, operand 0, single buffered']
    #allocation3 [shape = 's32[1]{0}', space=sflag, size = 0x4, scoped, tag = 'scoped memory for tpu_custom_call.1']
    %8 = vsyncpa [#allocation3], 0
    // Predicated region
    $region2: #{tpu_custom_call.1} parent=1 // pred_check
      _
    $region3: #{tpu_custom_call.1} parent=1 // pred_check_branch
      %10 = sbr.rel (0) target = $region5
    $region4: #{tpu_custom_call.1} parent=1 // pred_region
      %s12 = ssub.s32 256, 256
      %13 = vsyncadd [#allocation3], %s12
      %s14 = sshll.u32 [#allocation2], 4
      %s15 = int_to_ptr.vmem [resolvable:$true] %s14
      %20 = dma.hbm_to_vmem [thread:$0]  %s0, 256, %s15, [#allocation3], 128, 128, 8
    $region5: #{tpu_custom_call.1} parent=1 // pred_fallthru
      _
    // Predicated region
    $region6: #{tpu_custom_call.1} parent=1 // pred_check
      _
    $region7: #{tpu_custom_call.1} parent=1 // pred_check_branch
      %22 = sbr.rel (0) target = $region9
    $region8: #{tpu_custom_call.1} parent=1 // pred_region
      %23 = dma.done [#allocation3], 256
    $region9: #{tpu_custom_call.1} parent=1 // pred_fallthru
      _
    %p24 = scmp.eq.s32.totalorder 0, 0
    // Predicated region
    $region10: #{tpu_custom_call.1} parent=1 // pred_check
      %p25 = pneg %p24
    $region11: #{tpu_custom_call.1} parent=1 // pred_check_branch
      %27 = sbr.rel (%p25) target = $region13
    $region12: #{tpu_custom_call.1} parent=1 // pred_region
      %vm28 = vcmask 3072
      %29 = vst.msk [vmem:[%s1] sm:$0xf] %vm28, 0.0
      %30 = vst.msk [vmem:[%s2] sm:$0xf] %vm28, 0.0
    $region13: #{tpu_custom_call.1} parent=1 // pred_fallthru
      _
    %v31 = vld [vmem:[#allocation2] sm:$0xff]
    %v32 = vld [vmem:[#allocation2 + $0x8] sm:$0xff]
    %v35 = vcombine.high %v31, %v31
    %v36 = vcombine.high %v32, %v32
    %vm39 = vcmask 1043456
    %v40 = vsel %vm39, %v31, 0.0
    %v41 = vsel %vm39, %v32, 0.0
    %v42 = vadd.f32 %v40, %v41
    %v43 = vsel %vm39, %v35, 0.0
    %v44 = vsel %vm39, %v36, 0.0
    %v45 = vadd.f32 %v43, %v44
    %v46 = vmul.f32 %v31, %v31
    %v47 = vmul.f32 %v32, %v32
    %v50 = vcombine.high %v46, %v46
    %v51 = vcombine.high %v47, %v47
    %v54 = vsel %vm39, %v46, 0.0
    %v55 = vsel %vm39, %v47, 0.0
    %v56 = vadd.f32 %v54, %v55
    %v57 = vsel %vm39, %v50, 0.0
    %v58 = vsel %vm39, %v51, 0.0
    %v59 = vadd.f32 %v57, %v58
    %v60 = vld [vmem:[%s1] sm:$0xf]
    %v61 = vsel %vm39, %v42, 0.0
    %v62 = vsel %vm39, %v45, 0.0
    %v63 = vadd.f32 %v61, %v62
    %64 = vadd.xlane.f32.xlu0 %v63
    %v65 = vpop.xlane.xlu0 %64
    %v66 = vadd.f32 %v60, %v65
    %vm67 = vcmask 3072
    %68 = vst.msk [vmem:[%s1] sm:$0xf] %vm67, %v66
    %v69 = vld [vmem:[%s2] sm:$0xf]
    %v70 = vsel %vm39, %v56, 0.0
    %v71 = vsel %vm39, %v59, 0.0
    %v72 = vadd.f32 %v70, %v71
    %73 = vadd.xlane.f32.xlu0 %v72
    %v74 = vpop.xlane.xlu0 %73
    %v75 = vadd.f32 %v69, %v74
    %76 = vst.msk [vmem:[%s2] sm:$0xf] %vm67, %v75
    // Predicated region
    $region14: #{tpu_custom_call.1} parent=1 // pred_check
      _
    $region15: #{tpu_custom_call.1} parent=1 // pred_check_branch
      %78 = sbr.rel (0) target = $region17
    $region16: #{tpu_custom_call.1} parent=1 // pred_region
      _
    $region17: #{tpu_custom_call.1} parent=1 // pred_fallthru
      _
    // Predicated region
    $region18: #{tpu_custom_call.1} parent=1 // pred_check
      _
    $region19: #{tpu_custom_call.1} parent=1 // pred_check_branch
      %80 = sbr.rel (0) target = $region21
    $region20: #{tpu_custom_call.1} parent=1 // pred_region
      _
    $region21: #{tpu_custom_call.1} parent=1 // pred_fallthru
      _
    // Predicated region
    $region22: #{tpu_custom_call.1} parent=1 // pred_check
      _
    $region23: #{tpu_custom_call.1} parent=1 // pred_check_branch
      %82 = sbr.rel (0) target = $region25
    $region24: #{tpu_custom_call.1} parent=1 // pred_region
      _
    $region25: #{tpu_custom_call.1} parent=1 // pred_fallthru
      _
    // Predicated region
    $region26: #{tpu_custom_call.1} parent=1 // pred_check
      _
    $region27: #{tpu_custom_call.1} parent=1 // pred_check_branch
      %84 = sbr.rel (0) target = $region29
    $region28: #{tpu_custom_call.1} parent=1 // pred_region
      _
    $region29: #{tpu_custom_call.1} parent=1 // pred_fallthru
      _
    %85 = vsyncpa [#allocation3], 1

</llo_original>
